<compile_context>
chip_gen: v7x
topology: tpu7x:2x2x1
jax: 0.10.0
libtpu: 0.0.40
codegen_flags: <defaults>
</compile_context>

<pallas_src>
import functools

import jax
import jax.numpy as jnp
from jax.experimental import pallas as pl
from jax.experimental.pallas import tpu as pltpu


# ----------------------------- Pallas kernels ------------------------------

def conv_stats_kernel(p_ref, w_ref, stats_ref, *, tm, m0):
    """Sub-pixel conv matmul -> per-tile BN partial statistics only.

    p_ref:     (tm, K_pad)      bf16 patch tile (3x3 im2col of original input)
    w_ref:     (K_pad, c4)      bf16 phase-packed weights
    stats_ref: (1, 2, c4)  f32: row 0 = per-column sum over valid tile rows,
                                row 1 = per-column sum of squares about the
                                        tile mean (padded rows masked out).
    """
    acc = jnp.dot(p_ref[...], w_ref[...], preferred_element_type=jnp.float32)
    s = jnp.sum(acc, axis=0, keepdims=True)                      # (1, c4)

    i = pl.program_id(0)
    cnt = jnp.minimum(tm, m0 - i * tm).astype(jnp.float32)       # valid rows
    tile_mean = s / cnt                                          # (1, c4)
    rows = jax.lax.broadcasted_iota(jnp.int32, (tm, 1), 0)
    valid = (i * tm + rows) < m0                                 # (tm, 1)
    centered = jnp.where(valid, acc - tile_mean, 0.0)
    m2 = jnp.sum(centered * centered, axis=0, keepdims=True)     # (1, c4)

    stats_ref[0, 0:1, :] = s
    stats_ref[0, 1:2, :] = m2


def conv_bn_kernel(p_ref, w_ref, scale_ref, shift_ref, o_ref):
    """Recompute the small-K conv matmul and fuse BN apply into the output."""
    acc = jnp.dot(p_ref[...], w_ref[...], preferred_element_type=jnp.float32)
    o_ref[...] = (acc * scale_ref[...] + shift_ref[...]).astype(o_ref.dtype)


# ------------------------------- glue (JAX) --------------------------------

_VMEM_CAP_BYTES = 56 * 1024 * 1024      # stay under v7x's 64 MiB physical VMEM


def _round_up(x, m):
    return ((x + m - 1) // m) * m


def _vmem_footprint_bytes(tm, k_pad, c4):
    """Double-buffered block footprint of the heavier of the two passes."""
    pass1 = 2 * (tm * k_pad * 2) + 2 * (k_pad * c4 * 2) + 2 * (2 * c4 * 4)
    pass2 = (2 * (tm * k_pad * 2) + 2 * (k_pad * c4 * 2)
             + 2 * 2 * (c4 * 4) + 2 * (tm * c4 * 4))
    return max(pass1, pass2)


def _im2col_3x3_same(x_nhwc):
    """(N,H,W,C) -> (N*H*W, 9*C) patches, feature order (kh, kw, c)."""
    n, h, w, c = x_nhwc.shape
    xp = jnp.pad(x_nhwc, ((0, 0), (1, 1), (1, 1), (0, 0)))
    cols = [xp[:, kh:kh + h, kw:kw + w, :] for kh in range(3) for kw in range(3)]
    return jnp.concatenate(cols, axis=-1).reshape(n * h * w, 9 * c)


def _subpixel_weights(conv_w, c4):
    """Fold nearest-2x upsample into the conv weights, phases packed first.

    Output pixel (2i+di, 2j+dj) of (upsample2x -> conv3x3) only touches the
    3x3 neighborhood of source pixel (i, j).  Returns (9*C_in, c4) so that
    patches(x) @ W_big gives all 4 phases at once; the output-column layout is
    (di, dj, o) contiguous over the first 4*C_out columns, zero-padded to c4.
    """
    # r[d, kh', kh] = 1 if tap kh of row-phase di=d lands on original offset kh'-1.
    r = jnp.array([[[1., 0., 0.],
                    [0., 1., 1.],
                    [0., 0., 0.]],
                   [[0., 0., 0.],
                    [1., 1., 0.],
                    [0., 0., 1.]]], dtype=jnp.float32)            # (2, 3, 3)
    c_out, c_in = conv_w.shape[0], conv_w.shape[1]
    w_t = jnp.transpose(conv_w, (2, 3, 1, 0)).astype(jnp.float32)  # (kh,kw,ci,o)
    # (di, dj, kh', kw', ci, o)
    w_eff = jnp.einsum('dxk,eyl,klco->dexyco', r, r, w_t)
    # -> (kh', kw', ci, di, dj, o) -> (9*C_in, 4*C_out) -> pad once to c4
    w_big = jnp.transpose(w_eff, (2, 3, 4, 0, 1, 5)).reshape(9 * c_in, 4 * c_out)
    return jnp.pad(w_big, ((0, 0), (0, c4 - 4 * c_out)))


def up_block_forward(x_nchw, conv_w, conv_b, bn_gamma, bn_beta, *,
                     tm=1024, eps=1e-5, vmem_limit_bytes=None):
    """x_nchw: (N, C_in, H, W) -> (N, C_out, 2H, 2W)."""
    # conv_b is accepted for interface parity but intentionally unused:
    # training-mode BatchNorm subtracts the batch mean, which exactly cancels
    # a constant per-channel bias.  (Not valid for eval-mode/running stats.)
    del conv_b
    n, c_in, h, w = x_nchw.shape
    c_out = conv_w.shape[0]

    # Padded sizes: combined phase-channel axis padded ONCE to a lane multiple.
    c_live = 4 * c_out
    c4 = _round_up(c_live, 128)
    k = 9 * c_in
    k_pad = _round_up(k, 16)
    m0 = n * h * w

    # Tile sizing: >= 2 M-tiles (v7x megacore) and within the VMEM budget.
    tm_cap = max(256, _round_up((m0 + 1) // 2, 256))
    tm = max(256, min(_round_up(tm, 256), tm_cap))
    while tm > 256 and _vmem_footprint_bytes(tm, k_pad, c4) > _VMEM_CAP_BYTES:
        tm = max(256, tm // 2)
    m_pad = _round_up(m0, tm)
    num_tiles = m_pad // tm
    if vmem_limit_bytes is None:
        vmem_limit_bytes = min(
            _VMEM_CAP_BYTES,
            max(_vmem_footprint_bytes(tm, k_pad, c4) + (8 << 20), 16 << 20))

    # --- XLA glue: layout + bf16 im2col of the ORIGINAL (non-upsampled) input
    x_nhwc = jnp.transpose(x_nchw, (0, 2, 3, 1)).astype(jnp.bfloat16)
    patches = _im2col_3x3_same(x_nhwc)                               # (m0, k)
    patches = jnp.pad(patches, ((0, m_pad - m0), (0, k_pad - k)))

    w_big = _subpixel_weights(conv_w, c4)                            # (k, c4)
    w_big = jnp.pad(w_big, ((0, k_pad - k), (0, 0))).astype(jnp.bfloat16)

    grid_cparams = pltpu.CompilerParams(
        dimension_semantics=("parallel",),
        vmem_limit_bytes=vmem_limit_bytes)

    # --- Pass 1: per-tile BN partial statistics (no conv intermediate) ---
    stats = pl.pallas_call(
        functools.partial(conv_stats_kernel, tm=tm, m0=m0),
        out_shape=jax.ShapeDtypeStruct((num_tiles, 2, c4), jnp.float32),
        grid_spec=pltpu.PrefetchScalarGridSpec(
            num_scalar_prefetch=0,
            grid=(num_tiles,),
            in_specs=[
                pl.BlockSpec((tm, k_pad), lambda i: (i, 0)),
                pl.BlockSpec((k_pad, c4), lambda i: (0, 0)),
            ],
            out_specs=pl.BlockSpec((1, 2, c4), lambda i: (i, 0, 0)),
        ),
        compiler_params=grid_cparams,
    )(patches, w_big)

    # --- Tiny cross-tile / cross-phase merge in XLA (Chan parallel variance)
    sums = stats[:, 0, :c_live].reshape(num_tiles, 4, c_out)
    m2s = stats[:, 1, :c_live].reshape(num_tiles, 4, c_out)
    counts = jnp.array([min(tm, m0 - i * tm) for i in range(num_tiles)],
                       dtype=jnp.float32).reshape(num_tiles, 1, 1)
    total_count = jnp.float32(4 * m0)                     # = N * 2H * 2W
    mean = jnp.sum(sums, axis=(0, 1)) / total_count       # (c_out,)
    group_mean = sums / counts
    m2 = (jnp.sum(m2s, axis=(0, 1))
          + jnp.sum(counts * (group_mean - mean) ** 2, axis=(0, 1)))
    var = jnp.maximum(m2 / total_count, 0.0)              # biased variance
    inv = jax.lax.rsqrt(var + eps)
    scale_c = bn_gamma.astype(jnp.float32) * inv
    shift_c = bn_beta.astype(jnp.float32) - mean * scale_c
    scale_row = jnp.pad(jnp.tile(scale_c, 4), (0, c4 - c_live)).reshape(1, c4)
    shift_row = jnp.pad(jnp.tile(shift_c, 4), (0, c4 - c_live)).reshape(1, c4)

    # --- Pass 2: recompute the small-K matmul, fuse BN apply into output ---
    bn_out = pl.pallas_call(
        conv_bn_kernel,
        out_shape=jax.ShapeDtypeStruct((m_pad, c4), jnp.float32),
        grid_spec=pltpu.PrefetchScalarGridSpec(
            num_scalar_prefetch=0,
            grid=(num_tiles,),
            in_specs=[
                pl.BlockSpec((tm, k_pad), lambda i: (i, 0)),
                pl.BlockSpec((k_pad, c4), lambda i: (0, 0)),
                pl.BlockSpec((1, c4), lambda i: (0, 0)),
                pl.BlockSpec((1, c4), lambda i: (0, 0)),
            ],
            out_specs=pl.BlockSpec((tm, c4), lambda i: (i, 0)),
        ),
        compiler_params=grid_cparams,
    )(patches, w_big, scale_row, shift_row)

    # --- Reassemble the 4 sub-pixel phases into (N, 2H, 2W, C) -> NCHW ---
    y = bn_out[:m0, :c_live].reshape(n, h, w, 2, 2, c_out)
    y = jnp.transpose(y, (0, 1, 3, 2, 4, 5)).reshape(n, 2 * h, 2 * w, c_out)
    return jnp.transpose(y, (0, 3, 1, 2))


# ------------------------------ reference ----------------------------------

def up_block_reference(x_nchw, conv_w, conv_b, bn_gamma, bn_beta, eps=1e-5):
    x_nhwc = jnp.transpose(x_nchw, (0, 2, 3, 1))
    x_up = jnp.repeat(jnp.repeat(x_nhwc, 2, axis=1), 2, axis=2)
    w_hwio = jnp.transpose(conv_w, (2, 3, 1, 0))  # (3,3,C_in,C_out)
    y = jax.lax.conv_general_dilated(
        x_up, w_hwio, window_strides=(1, 1), padding="SAME",
        dimension_numbers=("NHWC", "HWIO", "NHWC"))
    y = y + conv_b.reshape(1, 1, 1, -1)
    mean = jnp.mean(y, axis=(0, 1, 2), keepdims=True)
    var = jnp.mean((y - mean) ** 2, axis=(0, 1, 2), keepdims=True)
    y = (y - mean) * jax.lax.rsqrt(var + eps) * bn_gamma.reshape(1, 1, 1, -1) \
        + bn_beta.reshape(1, 1, 1, -1)
    return jnp.transpose(y, (0, 3, 1, 2))


# -------------------------------- main --------------------------------------

def _run_case(key, n, c_in, c_out, h, w, tm, gamma, beta):
    k_x, k_w, k_b = jax.random.split(key, 3)
    x = jax.random.normal(k_x, (n, c_in, h, w), dtype=jnp.float32)
    conv_w = 0.1 * jax.random.normal(k_w, (c_out, c_in, 3, 3), dtype=jnp.float32)
    conv_b = 0.05 * jax.random.normal(k_b, (c_out,), dtype=jnp.float32)

    out = jax.block_until_ready(
        up_block_forward(x, conv_w, conv_b, gamma, beta, tm=tm))
    ref = jax.block_until_ready(
        up_block_reference(x, conv_w, conv_b, gamma, beta))

    assert out.shape == (n, c_out, 2 * h, 2 * w), out.shape
    # bf16 matmul inputs with f32 accumulation -> loosened tolerance.
    if not jnp.allclose(out, ref, atol=5e-2, rtol=5e-2):
        max_err = float(jnp.max(jnp.abs(out - ref)))
        raise AssertionError(f"Pallas UpBlock mismatch, max abs err={max_err}")


if __name__ == "__main__":
    key = jax.random.PRNGKey(0)
    k1, k2, kg, kb = jax.random.split(key, 4)

    # Main case (matches reported input shape): 2 M-tiles, default BN params.
    _run_case(k1, n=2, c_in=4, c_out=8, h=16, w=16, tm=256,
              gamma=jnp.ones((8,), jnp.float32),
              beta=jnp.zeros((8,), jnp.float32))

    # Second case: non-tile-multiple M (tail padding + row masking), padded K,
    # non-trivial gamma/beta to exercise the general scale/shift path.
    gamma2 = 1.0 + 0.1 * jax.random.normal(kg, (16,), dtype=jnp.float32)
    beta2 = 0.1 * jax.random.normal(kb, (16,), dtype=jnp.float32)
    _run_case(k2, n=2, c_in=6, c_out=16, h=12, w=12, tm=512,
              gamma=gamma2, beta=beta2)

    print("KERNEL_OK")
</pallas_src>

<mosaic_0001>
module attributes {stable_mosaic.version = 11 : i64} {
  func.func @conv_stats_kernel(%arg0: i32, %arg1: memref<256x48xbf16, #tpu.memory_space<vmem>>, %arg2: memref<48x128xbf16, #tpu.memory_space<vmem>>, %arg3: memref<1x2x128xf32, #tpu.memory_space<vmem>>) attributes {dimension_semantics = [#tpu.dimension_semantics<parallel>], iteration_bounds = array<i64: 2>, scalar_prefetch = 0 : i64, scratch_operands = 0 : i64, tpu.core_type = #tpu.core_type<tc>, window_params = [{transform_indices = @transform_0, window_bounds = array<i64: 256, 48>}, {pipeline_mode = #tpu.pipeline_mode<synchronous>, transform_indices = @transform_1, window_bounds = array<i64: 48, 128>}, {transform_indices = @transform_2, window_bounds = array<i64: 1, 2, 128>}]} {
    %c0 = arith.constant 0 : index
    %c0_0 = arith.constant 0 : index
    %0 = vector.load %arg1[%c0, %c0_0] : memref<256x48xbf16, #tpu.memory_space<vmem>>, vector<256x48xbf16>
    %c0_1 = arith.constant 0 : index
    %c0_2 = arith.constant 0 : index
    %1 = vector.load %arg2[%c0_1, %c0_2] : memref<48x128xbf16, #tpu.memory_space<vmem>>, vector<48x128xbf16>
    %cst = arith.constant dense<0.000000e+00> : vector<256x128xf32>
    %2 = tpu.matmul %0, %1, %cst {dimension_numbers = #tpu.dot_dimension_numbers<[1], [0], [0], [1], [0, 0, 1, 1], [], []>} : vector<256x48xbf16>, vector<48x128xbf16>, vector<256x128xf32> -> vector<256x128xf32>
    %cst_3 = arith.constant dense<0.000000e+00> : vector<128xf32>
    %3 = vector.multi_reduction <add>, %2, %cst_3 [0] : vector<256x128xf32> to vector<128xf32>
    %4 = vector.shape_cast %3 : vector<128xf32> to vector<1x128xf32>
    %c256_i32 = arith.constant 256 : i32
    %5 = arith.muli %arg0, %c256_i32 : i32
    %c512_i32 = arith.constant 512 : i32
    %6 = arith.subi %c512_i32, %5 : i32
    %c256_i32_4 = arith.constant 256 : i32
    %7 = arith.minsi %c256_i32_4, %6 : i32
    %8 = arith.sitofp %7 : i32 to f32
    %9 = vector.broadcast %8 : f32 to vector<1x128xf32>
    %10 = arith.divf %4, %9 : vector<1x128xf32>
    %11 = tpu.iota {dimensions = array<i32: 0>} : vector<256x1xi32>
    %c256_i32_5 = arith.constant 256 : i32
    %12 = arith.muli %arg0, %c256_i32_5 : i32
    %13 = vector.broadcast %12 : i32 to vector<256x1xi32>
    %14 = arith.addi %13, %11 : vector<256x1xi32>
    %c512_i32_6 = arith.constant 512 : i32
    %15 = vector.broadcast %c512_i32_6 : i32 to vector<256x1xi32>
    %16 = arith.cmpi slt, %14, %15 : vector<256x1xi32>
    %17 = vector.broadcast %10 : vector<1x128xf32> to vector<256x128xf32>
    %18 = arith.subf %2, %17 : vector<256x128xf32>
    %cst_7 = arith.constant 0.000000e+00 : f32
    %19 = vector.shape_cast %16 : vector<256x1xi1> to vector<256x1xi1>
    %20 = vector.broadcast %19 : vector<256x1xi1> to vector<256x128xi1>
    %21 = vector.broadcast %cst_7 : f32 to vector<256x128xf32>
    %22 = arith.select %20, %18, %21 : vector<256x128xi1>, vector<256x128xf32>
    %23 = arith.mulf %22, %22 : vector<256x128xf32>
    %cst_8 = arith.constant dense<0.000000e+00> : vector<128xf32>
    %24 = vector.multi_reduction <add>, %23, %cst_8 [0] : vector<256x128xf32> to vector<128xf32>
    %25 = vector.shape_cast %24 : vector<128xf32> to vector<1x128xf32>
    %c0_9 = arith.constant 0 : index
    %c0_10 = arith.constant 0 : index
    %c0_11 = arith.constant 0 : index
    %26 = vector.load %arg3[%c0_9, %c0_10, %c0_11] : memref<1x2x128xf32, #tpu.memory_space<vmem>>, vector<1x1x128xf32>
    %27 = vector.shape_cast %26 : vector<1x1x128xf32> to vector<1x128xf32>
    %28 = vector.shape_cast %4 : vector<1x128xf32> to vector<1x1x128xf32>
    tpu.vector_store %arg3[%c0_9, %c0_10, %c0_11], %28 {strides = array<i32>} : memref<1x2x128xf32, #tpu.memory_space<vmem>>, vector<1x1x128xf32>,
    %c0_12 = arith.constant 0 : index
    %c1 = arith.constant 1 : index
    %c0_13 = arith.constant 0 : index
    %29 = vector.load %arg3[%c0_12, %c1, %c0_13] : memref<1x2x128xf32, #tpu.memory_space<vmem>>, vector<1x1x128xf32>
    %30 = vector.shape_cast %29 : vector<1x1x128xf32> to vector<1x128xf32>
    %31 = vector.shape_cast %25 : vector<1x128xf32> to vector<1x1x128xf32>
    tpu.vector_store %arg3[%c0_12, %c1, %c0_13], %31 {strides = array<i32>} : memref<1x2x128xf32, #tpu.memory_space<vmem>>, vector<1x1x128xf32>,
    return
  }
  func.func @transform_0(%arg0: i32) -> (i32, i32) {
    %c0_i32 = arith.constant 0 : i32
    %c0_i32_0 = arith.constant 0 : i32
    return %arg0, %c0_i32 : i32, i32
  }
  func.func @transform_1(%arg0: i32) -> (i32, i32) {
    %c0_i32 = arith.constant 0 : i32
    %c0_i32_0 = arith.constant 0 : i32
    %c0_i32_1 = arith.constant 0 : i32
    return %c0_i32, %c0_i32_0 : i32, i32
  }
  func.func @transform_2(%arg0: i32) -> (i32, i32, i32) {
    %c0_i32 = arith.constant 0 : i32
    %c0_i32_0 = arith.constant 0 : i32
    %c0_i32_1 = arith.constant 0 : i32
    return %arg0, %c0_i32, %c0_i32_0 : i32, i32, i32
  }
}

</mosaic_0001>

<llo_original>
// kernel: tpu_custom_call.1
$region0: #{tpu_custom_call.1}
  #allocation0 [shape = 'u32[]', space=smem, size = 0x4, offset = 0x4, fixed_abs, tag = 'smem constant byte address 0x4 - core index']
  #allocation1 [shape = 'u32[144,128]{1,0:T(1,128)}', space=vmem, size = 0x12000, scoped, tag = 'internal scratch']
  %s0 = inlined_call_operand.vmem [shape: bf16[512,48], index: 0, kind: input, shape index: {}]
  %s1 = inlined_call_operand.vmem [shape: bf16[48,128], index: 1, kind: input, shape index: {}]
  %s2 = inlined_call_operand.hbm [shape: f32[2,2,128], index: 2, kind: output, shape index: {}]
  %s3 = sld [smem:[#allocation0]]
  $region41: #{tpu_custom_call.1} parent=0
    _
  %s5 = ssub.s32 1, %s3
  %s6 = scalar_select 0, %s5, %s3
  $region1: #{tpu_custom_call.1} parent=0
    #allocation2 [shape = 'u8[2048]{0}', space=vmem, size = 0x800, scoped, tag = 'output window, operand 0']
    #allocation3 [shape = 's32[2]{0}', space=sflag, size = 0x8, scoped, tag = 'scoped memory for tpu_custom_call.1']
    %7 = vsyncpa [#allocation3], 0
    %s8 = scalar_lea.sflag [#allocation3], 1
    %9 = vsyncpa %s8, 0
    loop: start=0, step=1, limit=4
    $region2: #{tpu_custom_call.1} parent=1 // loop_pre_header
      _
    $region3: #{tpu_custom_call.1} parent=1 // loop_header
      %s11 = sphi 0, %s15
      %p12 = scmp.ge.s32.totalorder %s11, 4
      %s21 = sphi 0, %s23
      %s24 = sphi 0, %s21
      %s25 = sphi 0, %s24
      %s41 = sphi 0, %s25
      %s45 = sphi 0, %s45
      %s47 = sphi 0, %s45
      %s48 = sphi 0, %s47
      %s62 = sphi 0, %s48
      %s68 = sphi 0, %s70
      %s71 = sphi 0, %s68
      %s72 = sphi 0, %s71
      %s88 = sphi 0, %s72
    $region4: #{tpu_custom_call.1} parent=1 // loop_header_branch
      %14 = sbr.rel (%p12) target = $region8
    $region5: #{tpu_custom_call.1} parent=1 // loop_body
      %s16 = ssub.s32 %s11, 1
      %s17 = ssub.s32 %s11, 2
      %s18 = sadd.s32 %s11, 1
      %s19 = ssub.s32 %s11, %s18
      %p20 = scmp.eq.s32.totalorder %s19, 0
      %s22 = sadd.s32 %s21, 1
      %s23 = scalar_select %p20, %s21, %s22
      %p26 = pneg %p20
      %p27 = scmp.eq.s32.totalorder %s11, 1
      %p28 = por %p26, %p27
      %p29 = scmp.ne.s32.totalorder %s21, %s24
      %p30 = scmp.eq.s32.totalorder %s11, 0
      %p31 = por %p29, %p30
      %p32 = scmp.ne.s32.totalorder %s21, %s24
      %p33 = scmp.eq.s32.totalorder %s16, 1
      %p34 = por %p32, %p33
      %p35 = scmp.ne.s32.totalorder %s24, %s25
      %p36 = scmp.eq.s32.totalorder %s16, 0
      %p37 = por %p35, %p36
      %p38 = scmp.ne.s32.totalorder %s24, %s25
      %p39 = scmp.eq.s32.totalorder %s17, 1
      %p40 = por %p38, %p39
      %p42 = scmp.ne.s32.totalorder %s25, %s41
      %p43 = scmp.eq.s32.totalorder %s17, 0
      %p44 = por %p42, %p43
      %s46 = sadd.s32 %s45, 1
      %p49 = scmp.eq.s32.totalorder %s11, 1
      %p50 = scmp.ne.s32.totalorder %s45, %s47
      %p51 = scmp.eq.s32.totalorder %s11, 0
      %p52 = por %p50, %p51
      %p53 = scmp.ne.s32.totalorder %s45, %s47
      %p54 = scmp.eq.s32.totalorder %s16, 1
      %p55 = por %p53, %p54
      %p56 = scmp.ne.s32.totalorder %s47, %s48
      %p57 = scmp.eq.s32.totalorder %s16, 0
      %p58 = por %p56, %p57
      %p59 = scmp.ne.s32.totalorder %s47, %s48
      %p60 = scmp.eq.s32.totalorder %s17, 1
      %p61 = por %p59, %p60
      %p63 = scmp.ne.s32.totalorder %s48, %s62
      %p64 = scmp.eq.s32.totalorder %s17, 0
      %p65 = por %p63, %p64
      %s66 = ssub.s32 %s11, %s18
      %p67 = scmp.eq.s32.totalorder %s66, 0
      %s69 = sadd.s32 %s68, 1
      %s70 = scalar_select %p67, %s68, %s69
      %p73 = pneg %p67
      %p74 = scmp.eq.s32.totalorder %s11, 1
      %p75 = por %p73, %p74
      %p76 = scmp.ne.s32.totalorder %s68, %s71
      %p77 = scmp.eq.s32.totalorder %s11, 0
      %p78 = por %p76, %p77
      %p79 = scmp.ne.s32.totalorder %s68, %s71
      %p80 = scmp.eq.s32.totalorder %s16, 1
      %p81 = por %p79, %p80
      %p82 = scmp.ne.s32.totalorder %s71, %s72
      %p83 = scmp.eq.s32.totalorder %s16, 0
      %p84 = por %p82, %p83
      %p85 = scmp.ne.s32.totalorder %s71, %s72
      %p86 = scmp.eq.s32.totalorder %s17, 1
      %p87 = por %p85, %p86
      %p89 = scmp.ne.s32.totalorder %s72, %s88
      %p90 = scmp.eq.s32.totalorder %s17, 0
      %p91 = por %p89, %p90
      %p92 = scmp.le.s32.totalorder 1, %s11
      %p93 = scmp.lt.s32.totalorder %s11, 3
      %p94 = pnand %p92, %p93
      %p95 = pneg %p94
      // Predicated region
      $region9: #{tpu_custom_call.1} parent=5 // pred_check
        _
      $region10: #{tpu_custom_call.1} parent=5 // pred_check_branch
        %97 = sbr.rel (%p94) target = $region12
      $region11: #{tpu_custom_call.1} parent=5 // pred_region
        %s98 = ssub.s32 %s11, 1
        // Predicated region
        $region13: #{tpu_custom_call.1} parent=11 // pred_check
          %p99 = pneg %p58
        $region14: #{tpu_custom_call.1} parent=11 // pred_check_branch
          %101 = sbr.rel (%p99) target = $region16
        $region15: #{tpu_custom_call.1} parent=11 // pred_region
          _
        $region16: #{tpu_custom_call.1} parent=11 // pred_fallthru
          _
      $region12: #{tpu_custom_call.1} parent=5 // pred_fallthru
        _
      %p102 = scmp.lt.s32.totalorder %s11, 2
      // Predicated region
      $region17: #{tpu_custom_call.1} parent=5 // pred_check
        %p103 = pneg %p102
      $region18: #{tpu_custom_call.1} parent=5 // pred_check_branch
        %105 = sbr.rel (%p103) target = $region20
      $region19: #{tpu_custom_call.1} parent=5 // pred_region
        // Predicated region
        $region21: #{tpu_custom_call.1} parent=19 // pred_check
          %p106 = pneg %p31
        $region22: #{tpu_custom_call.1} parent=19 // pred_check_branch
          %108 = sbr.rel (%p106) target = $region24
        $region23: #{tpu_custom_call.1} parent=19 // pred_region
          %s109 = smul.u32 32, %s11
          %p110 = scmp.lt.s32.totalorder %s109, 63
          %s111 = scalar_select %p110, %s109, 63
          %s112 = smul.addr %s111, 4
          %s113 = scalar_lea.vmem %s0, %s112
          %s114 = smul.u32 32, %s11
        $region24: #{tpu_custom_call.1} parent=19 // pred_fallthru
          _
      $region20: #{tpu_custom_call.1} parent=5 // pred_fallthru
        _
      %p115 = scmp.le.s32.totalorder 1, %s11
      %p116 = scmp.lt.s32.totalorder %s11, 3
      %p117 = pnand %p115, %p116
      %p118 = pneg %p117
      // Predicated region
      $region25: #{tpu_custom_call.1} parent=5 // pred_check
        _
      $region26: #{tpu_custom_call.1} parent=5 // pred_check_branch
        %120 = sbr.rel (%p117) target = $region28
      $region27: #{tpu_custom_call.1} parent=5 // pred_region
        %s121 = ssub.s32 %s11, 1
        %s122 = smul.u32 32, %s16
        %p123 = scmp.lt.s32.totalorder %s122, 63
        %s124 = scalar_select %p123, %s122, 63
        %s125 = smul.addr %s124, 4
        %s126 = scalar_lea.vmem %s0, %s125
        %p127 = pneg %p37
        %p128 = pneg %p34
        %p129 = pneg %p58
        %p130 = pneg %p55
        %p131 = pneg %p84
        %p132 = pneg %p81
        %s133 = sand.u32 %s71, 1
        %s134 = scalar_lea.sflag [#allocation3], %s133
        %s135 = sand.u32 %s71, 1
        %s136 = smul.addr %s135, 2
        %s137 = scalar_lea.vmem [#allocation2], %s136
        %s138 = smul.u32 32, %s16
        %p139 = scmp.lt.s32.totalorder %s138, 63
        %s140 = scalar_select %p139, %s138, 63
        %s141 = smul.addr %s140, 4
        %s142 = scalar_lea.vmem %s0, %s141
        %s143 = smul.u32 32, %s16
        %v145 = vld [vmem:[%s142] sm:$0xf]
        %v146 = vld [vmem:[%s142 + $0x4] sm:$0xf]
        %v147 = vld [vmem:[%s142 + $0x8] sm:$0xf]
        %v148 = vld [vmem:[%s142 + $0xc] sm:$0xf]
        %v149 = vld [vmem:[%s142 + $0x10] sm:$0xf]
        %v150 = vld [vmem:[%s142 + $0x14] sm:$0xf]
        %v151 = vld [vmem:[%s142 + $0x18] sm:$0xf]
        %v152 = vld [vmem:[%s142 + $0x1c] sm:$0xf]
        %v153 = vld [vmem:[%s142 + $0x20] sm:$0xf]
        %v154 = vld [vmem:[%s142 + $0x24] sm:$0xf]
        %v155 = vld [vmem:[%s142 + $0x28] sm:$0xf]
        %v156 = vld [vmem:[%s142 + $0x2c] sm:$0xf]
        %v157 = vld [vmem:[%s142 + $0x30] sm:$0xf]
        %v158 = vld [vmem:[%s142 + $0x34] sm:$0xf]
        %v159 = vld [vmem:[%s142 + $0x38] sm:$0xf]
        %v160 = vld [vmem:[%s142 + $0x3c] sm:$0xf]
        %v161 = vld [vmem:[%s142 + $0x40] sm:$0xf]
        %v162 = vld [vmem:[%s142 + $0x44] sm:$0xf]
        %v163 = vld [vmem:[%s142 + $0x48] sm:$0xf]
        %v164 = vld [vmem:[%s142 + $0x4c] sm:$0xf]
        %v165 = vld [vmem:[%s142 + $0x50] sm:$0xf]
        %v166 = vld [vmem:[%s142 + $0x54] sm:$0xf]
        %v167 = vld [vmem:[%s142 + $0x58] sm:$0xf]
        %v168 = vld [vmem:[%s142 + $0x5c] sm:$0xf]
        %v169 = vld [vmem:[%s142 + $0x60] sm:$0xf]
        %v170 = vld [vmem:[%s142 + $0x64] sm:$0xf]
        %v171 = vld [vmem:[%s142 + $0x68] sm:$0xf]
        %v172 = vld [vmem:[%s142 + $0x6c] sm:$0xf]
        %v173 = vld [vmem:[%s142 + $0x70] sm:$0xf]
        %v174 = vld [vmem:[%s142 + $0x74] sm:$0xf]
        %v175 = vld [vmem:[%s142 + $0x78] sm:$0xf]
        %v176 = vld [vmem:[%s142 + $0x7c] sm:$0xf]
        %v177 = vld [vmem:[%s1] sm:$0xf]
        %v178 = vld [vmem:[%s1 + $0x4] sm:$0xf]
        %v179 = vld [vmem:[%s1 + $0x8] sm:$0xf]
        %v180 = vld [vmem:[%s1 + $0xc] sm:$0xf]
        %v181 = vld [vmem:[%s1 + $0x10] sm:$0xf]
        %v182 = vld [vmem:[%s1 + $0x14] sm:$0xf]
        %v215 = vunpack.c.l.b16 %v145
        %v216 = vunpack.c.l.b16 %v146
        %v217 = vunpack.c.l.b16 %v147
        %v218 = vunpack.c.l.b16 %v148
        %v219 = vunpack.c.l.b16 %v149
        %v220 = vunpack.c.l.b16 %v150
        %v221 = vunpack.c.l.b16 %v151
        %v222 = vunpack.c.l.b16 %v152
        %v223 = vunpack.c.l.b16 %v153
        %v224 = vunpack.c.l.b16 %v154
        %v225 = vunpack.c.l.b16 %v155
        %v226 = vunpack.c.l.b16 %v156
        %v227 = vunpack.c.l.b16 %v157
        %v228 = vunpack.c.l.b16 %v158
        %v229 = vunpack.c.l.b16 %v159
        %v230 = vunpack.c.l.b16 %v160
        %v231 = vunpack.c.l.b16 %v161
        %v232 = vunpack.c.l.b16 %v162
        %v233 = vunpack.c.l.b16 %v163
        %v234 = vunpack.c.l.b16 %v164
        %v235 = vunpack.c.l.b16 %v165
        %v236 = vunpack.c.l.b16 %v166
        %v237 = vunpack.c.l.b16 %v167
        %v238 = vunpack.c.l.b16 %v168
        %v239 = vunpack.c.l.b16 %v169
        %v240 = vunpack.c.l.b16 %v170
        %v241 = vunpack.c.l.b16 %v171
        %v242 = vunpack.c.l.b16 %v172
        %v243 = vunpack.c.l.b16 %v173
        %v244 = vunpack.c.l.b16 %v174
        %v245 = vunpack.c.l.b16 %v175
        %v246 = vunpack.c.l.b16 %v176
        %v247 = vpack.c.b16 %v216, %v215
        %v248 = vpack.c.b16 %v218, %v217
        %v249 = vpack.c.b16 %v220, %v219
        %v250 = vpack.c.b16 %v222, %v221
        %v251 = vpack.c.b16 %v224, %v223
        %v252 = vpack.c.b16 %v226, %v225
        %v253 = vpack.c.b16 %v228, %v227
        %v254 = vpack.c.b16 %v230, %v229
        %v255 = vpack.c.b16 %v232, %v231
        %v256 = vpack.c.b16 %v234, %v233
        %v257 = vpack.c.b16 %v236, %v235
        %v258 = vpack.c.b16 %v238, %v237
        %v259 = vpack.c.b16 %v240, %v239
        %v260 = vpack.c.b16 %v242, %v241
        %v261 = vpack.c.b16 %v244, %v243
        %v262 = vpack.c.b16 %v246, %v245
        %v269 = vunpack.c.l.b16 %v177
        %v270 = vunpack.c.l.b16 %v178
        %v271 = vunpack.c.l.b16 %v179
        %v272 = vunpack.c.l.b16 %v180
        %v273 = vunpack.c.l.b16 %v181
        %v274 = vunpack.c.l.b16 %v182
        %v275 = vpack.c.b16 %v270, %v269
        %v276 = vpack.c.b16 %v272, %v271
        %v277 = vpack.c.b16 %v274, %v273
        %vm281 = vcmask 392192
        %v283 = vsel %vm281, %v247, 0
        %v286 = vsel %vm281, %v248, 0
        %v289 = vsel %vm281, %v249, 0
        %v292 = vsel %vm281, %v250, 0
        %v295 = vsel %vm281, %v251, 0
        %v298 = vsel %vm281, %v252, 0
        %v301 = vsel %vm281, %v253, 0
        %v304 = vsel %vm281, %v254, 0
        %v307 = vsel %vm281, %v255, 0
        %v310 = vsel %vm281, %v256, 0
        %v313 = vsel %vm281, %v257, 0
        %v316 = vsel %vm281, %v258, 0
        %v319 = vsel %vm281, %v259, 0
        %v322 = vsel %vm281, %v260, 0
        %v325 = vsel %vm281, %v261, 0
        %v328 = vsel %vm281, %v262, 0
        %330 = vmatprep.subr.bf16.mxu0 0
        %331 = vmatpush1.bf16.msra.mxu0 %v275
        %332 = vmatprep.subr.bf16.mxu0 0
        %333 = vmatpush1.bf16.msra.mxu0 %v276
        %334 = vmatprep.subr.bf16.mxu0 0
        %335 = vmatpush1.bf16.msra.mxu0 %v277
        %336 = vmatprep.subr.bf16.mxu0 0
        %337 = vmatpush1.bf16.msra.mxu0 0
        %338 = vmatprep.subr.bf16.mxu0 0
        %339 = vmatpush1.bf16.msra.mxu0 0
        %340 = vmatprep.subr.bf16.mxu0 0
        %341 = vmatpush1.bf16.msra.mxu0 0
        %342 = vmatprep.subr.bf16.mxu0 0
        %343 = vmatpush1.bf16.msra.mxu0 0
        %344 = vmatprep.subr.bf16.mxu0 0
        %345 = vmatpush1.bf16.msra.mxu0 0
        %346 = vmatprep.subr.bf16.mxu0 0
        %347 = vmatpush1.bf16.msra.mxu0 0
        %348 = vmatprep.subr.bf16.mxu0 0
        %349 = vmatpush1.bf16.msra.mxu0 0
        %350 = vmatprep.subr.bf16.mxu0 0
        %351 = vmatpush1.bf16.msra.mxu0 0
        %352 = vmatprep.subr.bf16.mxu0 0
        %353 = vmatpush1.bf16.msra.mxu0 0
        %354 = vmatprep.subr.bf16.mxu0 0
        %355 = vmatpush1.bf16.msra.mxu0 0
        %356 = vmatprep.subr.bf16.mxu0 0
        %357 = vmatpush1.bf16.msra.mxu0 0
        %358 = vmatprep.subr.bf16.mxu0 0
        %359 = vmatpush1.bf16.msra.mxu0 0
        %360 = vmatprep.subr.bf16.mxu0 0
        %361 = vmatpush1.bf16.msra.mxu0 0
        %362 = vmatprep.mubr.bf16.mxu0 0
        %363 = vmatmul.mubr.bf16.gmra.mrb[0].mxu0 %v283
        %v364 = vpop.f32.mrb[0].mxu0
        %v365 = vadd.f32 0.0, %v364
        %v366 = vpop.f32.mrb[0].mxu0
        %v367 = vpop.f32.mrb[0].mxu0
        %v368 = vadd.f32 0.0, %v367
        %v369 = vpop.f32.mrb[0].mxu0
        %370 = vmatprep.mubr.bf16.mxu0 0
        %371 = vmatmul.mubr.bf16.gmra.mrb[0].mxu0 %v286
        %v372 = vpop.f32.mrb[0].mxu0
        %v373 = vadd.f32 0.0, %v372
        %v374 = vpop.f32.mrb[0].mxu0
        %v375 = vpop.f32.mrb[0].mxu0
        %v376 = vadd.f32 0.0, %v375
        %v377 = vpop.f32.mrb[0].mxu0
        %378 = vmatprep.mubr.bf16.mxu0 0
        %379 = vmatmul.mubr.bf16.gmra.mrb[0].mxu0 %v289
        %v380 = vpop.f32.mrb[0].mxu0
        %v381 = vadd.f32 0.0, %v380
        %v382 = vpop.f32.mrb[0].mxu0
        %v383 = vpop.f32.mrb[0].mxu0
        %v384 = vadd.f32 0.0, %v383
        %v385 = vpop.f32.mrb[0].mxu0
        %386 = vmatprep.mubr.bf16.mxu0 0
        %387 = vmatmul.mubr.bf16.gmra.mrb[0].mxu0 %v292
        %v388 = vpop.f32.mrb[0].mxu0
        %v389 = vadd.f32 0.0, %v388
        %v390 = vpop.f32.mrb[0].mxu0
        %v391 = vpop.f32.mrb[0].mxu0
        %v392 = vadd.f32 0.0, %v391
        %v393 = vpop.f32.mrb[0].mxu0
        %394 = vmatprep.mubr.bf16.mxu0 0
        %395 = vmatmul.mubr.bf16.gmra.mrb[0].mxu0 %v295
        %v396 = vpop.f32.mrb[0].mxu0
        %v397 = vadd.f32 0.0, %v396
        %v398 = vpop.f32.mrb[0].mxu0
        %v399 = vpop.f32.mrb[0].mxu0
        %v400 = vadd.f32 0.0, %v399
        %v401 = vpop.f32.mrb[0].mxu0
        %402 = vmatprep.mubr.bf16.mxu0 0
        %403 = vmatmul.mubr.bf16.gmra.mrb[0].mxu0 %v298
        %v404 = vpop.f32.mrb[0].mxu0
        %v405 = vadd.f32 0.0, %v404
        %v406 = vpop.f32.mrb[0].mxu0
        %v407 = vpop.f32.mrb[0].mxu0
        %v408 = vadd.f32 0.0, %v407
        %v409 = vpop.f32.mrb[0].mxu0
        %410 = vmatprep.mubr.bf16.mxu0 0
        %411 = vmatmul.mubr.bf16.gmra.mrb[0].mxu0 %v301
        %v412 = vpop.f32.mrb[0].mxu0
        %v413 = vadd.f32 0.0, %v412
        %v414 = vpop.f32.mrb[0].mxu0
        %v415 = vpop.f32.mrb[0].mxu0
        %v416 = vadd.f32 0.0, %v415
        %v417 = vpop.f32.mrb[0].mxu0
        %418 = vmatprep.mubr.bf16.mxu0 0
        %419 = vmatmul.mubr.bf16.gmra.mrb[0].mxu0 %v304
        %v420 = vpop.f32.mrb[0].mxu0
        %v421 = vadd.f32 0.0, %v420
        %v422 = vpop.f32.mrb[0].mxu0
        %v423 = vpop.f32.mrb[0].mxu0
        %v424 = vadd.f32 0.0, %v423
        %v425 = vpop.f32.mrb[0].mxu0
        %426 = vmatprep.mubr.bf16.mxu0 0
        %427 = vmatmul.mubr.bf16.gmra.mrb[0].mxu0 %v307
        %v428 = vpop.f32.mrb[0].mxu0
        %v429 = vadd.f32 0.0, %v428
        %v430 = vpop.f32.mrb[0].mxu0
        %v431 = vpop.f32.mrb[0].mxu0
        %v432 = vadd.f32 0.0, %v431
        %v433 = vpop.f32.mrb[0].mxu0
        %434 = vmatprep.mubr.bf16.mxu0 0
        %435 = vmatmul.mubr.bf16.gmra.mrb[0].mxu0 %v310
        %v436 = vpop.f32.mrb[0].mxu0
        %v437 = vadd.f32 0.0, %v436
        %v438 = vpop.f32.mrb[0].mxu0
        %v439 = vpop.f32.mrb[0].mxu0
        %v440 = vadd.f32 0.0, %v439
        %v441 = vpop.f32.mrb[0].mxu0
        %442 = vmatprep.mubr.bf16.mxu0 0
        %443 = vmatmul.mubr.bf16.gmra.mrb[0].mxu0 %v313
        %v444 = vpop.f32.mrb[0].mxu0
        %v445 = vadd.f32 0.0, %v444
        %v446 = vpop.f32.mrb[0].mxu0
        %v447 = vpop.f32.mrb[0].mxu0
        %v448 = vadd.f32 0.0, %v447
        %v449 = vpop.f32.mrb[0].mxu0
        %450 = vmatprep.mubr.bf16.mxu0 0
        %451 = vmatmul.mubr.bf16.gmra.mrb[0].mxu0 %v316
        %v452 = vpop.f32.mrb[0].mxu0
        %v453 = vadd.f32 0.0, %v452
        %v454 = vpop.f32.mrb[0].mxu0
        %v455 = vpop.f32.mrb[0].mxu0
        %v456 = vadd.f32 0.0, %v455
        %v457 = vpop.f32.mrb[0].mxu0
        %458 = vmatprep.mubr.bf16.mxu0 0
        %459 = vmatmul.mubr.bf16.gmra.mrb[0].mxu0 %v319
        %v460 = vpop.f32.mrb[0].mxu0
        %v461 = vadd.f32 0.0, %v460
        %v462 = vpop.f32.mrb[0].mxu0
        %v463 = vpop.f32.mrb[0].mxu0
        %v464 = vadd.f32 0.0, %v463
        %v465 = vpop.f32.mrb[0].mxu0
        %466 = vmatprep.mubr.bf16.mxu0 0
        %467 = vmatmul.mubr.bf16.gmra.mrb[0].mxu0 %v322
        %v468 = vpop.f32.mrb[0].mxu0
        %v469 = vadd.f32 0.0, %v468
        %v470 = vpop.f32.mrb[0].mxu0
        %v471 = vpop.f32.mrb[0].mxu0
        %v472 = vadd.f32 0.0, %v471
        %v473 = vpop.f32.mrb[0].mxu0
        %474 = vmatprep.mubr.bf16.mxu0 0
        %475 = vmatmul.mubr.bf16.gmra.mrb[0].mxu0 %v325
        %v476 = vpop.f32.mrb[0].mxu0
        %v477 = vadd.f32 0.0, %v476
        %v478 = vpop.f32.mrb[0].mxu0
        %v479 = vpop.f32.mrb[0].mxu0
        %v480 = vadd.f32 0.0, %v479
        %v481 = vpop.f32.mrb[0].mxu0
        %482 = vmatprep.mubr.bf16.mxu0 0
        %483 = vmatmul.mubr.bf16.gmra.mrb[0].mxu0 %v328
        %v484 = vpop.f32.mrb[0].mxu0
        %v485 = vadd.f32 0.0, %v484
        %v486 = vpop.f32.mrb[0].mxu0
        %v487 = vpop.f32.mrb[0].mxu0
        %v488 = vadd.f32 0.0, %v487
        %v489 = vpop.f32.mrb[0].mxu0
        %490 = vdwg.mxu0
        %v491 = vadd.f32 %v365, %v368
        %v492 = vadd.f32 %v491, %v373
        %v493 = vadd.f32 %v492, %v376
        %v494 = vadd.f32 %v493, %v381
        %v495 = vadd.f32 %v494, %v384
        %v496 = vadd.f32 %v495, %v389
        %v497 = vadd.f32 %v496, %v392
        %v498 = vadd.f32 %v497, %v397
        %v499 = vadd.f32 %v498, %v400
        %v500 = vadd.f32 %v499, %v405
        %v501 = vadd.f32 %v500, %v408
        %v502 = vadd.f32 %v501, %v413
        %v503 = vadd.f32 %v502, %v416
        %v504 = vadd.f32 %v503, %v421
        %v505 = vadd.f32 %v504, %v424
        %v506 = vadd.f32 %v505, %v429
        %v507 = vadd.f32 %v506, %v432
        %v508 = vadd.f32 %v507, %v437
        %v509 = vadd.f32 %v508, %v440
        %v510 = vadd.f32 %v509, %v445
        %v511 = vadd.f32 %v510, %v448
        %v512 = vadd.f32 %v511, %v453
        %v513 = vadd.f32 %v512, %v456
        %v514 = vadd.f32 %v513, %v461
        %v515 = vadd.f32 %v514, %v464
        %v516 = vadd.f32 %v515, %v469
        %v517 = vadd.f32 %v516, %v472
        %v518 = vadd.f32 %v517, %v477
        %v519 = vadd.f32 %v518, %v480
        %v520 = vadd.f32 %v519, %v485
        %v521 = vadd.f32 %v520, %v488
        %v522 = vrot.slane %v521, 4
        %v523 = vadd.f32 %v521, %v522
        %v524 = vrot.slane %v523, 2
        %v525 = vadd.f32 %v523, %v524
        %v526 = vrot.slane %v525, 1
        %v527 = vadd.f32 %v525, %v526
        %s528 = smul.u32 %s16, 256
        %s529 = ssub.s32 512, %s528
        %p530 = scmp.lt.s32.totalorder %s529, 256
        %s531 = scalar_select %p530, %s529, 256
        %s532 = scvt.s32.f32 %s531
        %v533 = vstv %s532
        %v534 = vrcp.pop %v533
        %v535 = vmul.f32 %v527, %v534
        %v536 = vlaneseq
        %v537 = vshrl.u32 %v536, 7
        %v538 = vadd.s32 %v537, 8
        %v539 = vadd.s32 %v537, 16
        %v540 = vadd.s32 %v537, 24
        %v541 = vadd.s32 %v537, 32
        %v542 = vadd.s32 %v537, 40
        %v543 = vadd.s32 %v537, 48
        %v544 = vadd.s32 %v537, 56
        %v545 = vadd.s32 %v537, 64
        %v546 = vadd.s32 %v537, 72
        %v547 = vadd.s32 %v537, 80
        %v548 = vadd.s32 %v537, 88
        %v549 = vadd.s32 %v537, 96
        %v550 = vadd.s32 %v537, 104
        %v551 = vadd.s32 %v537, 112
        %v552 = vadd.s32 %v537, 120
        %v553 = vadd.s32 %v537, 128
        %v554 = vadd.s32 %v537, 136
        %v555 = vadd.s32 %v537, 144
        %v556 = vadd.s32 %v537, 152
        %v557 = vadd.s32 %v537, 160
        %v558 = vadd.s32 %v537, 168
        %v559 = vadd.s32 %v537, 176
        %v560 = vadd.s32 %v537, 184
        %v561 = vadd.s32 %v537, 192
        %v562 = vadd.s32 %v537, 200
        %v563 = vadd.s32 %v537, 208
        %v564 = vadd.s32 %v537, 216
        %v565 = vadd.s32 %v537, 224
        %v566 = vadd.s32 %v537, 232
        %v567 = vadd.s32 %v537, 240
        %v568 = vadd.s32 %v537, 248
        %v569 = vstv %s528
        %v570 = vadd.s32 %v569, %v537
        %v571 = vadd.s32 %v569, %v538
        %v572 = vadd.s32 %v569, %v539
        %v573 = vadd.s32 %v569, %v540
        %v574 = vadd.s32 %v569, %v541
        %v575 = vadd.s32 %v569, %v542
        %v576 = vadd.s32 %v569, %v543
        %v577 = vadd.s32 %v569, %v544
        %v578 = vadd.s32 %v569, %v545
        %v579 = vadd.s32 %v569, %v546
        %v580 = vadd.s32 %v569, %v547
        %v581 = vadd.s32 %v569, %v548
        %v582 = vadd.s32 %v569, %v549
        %v583 = vadd.s32 %v569, %v550
        %v584 = vadd.s32 %v569, %v551
        %v585 = vadd.s32 %v569, %v552
        %v586 = vadd.s32 %v569, %v553
        %v587 = vadd.s32 %v569, %v554
        %v588 = vadd.s32 %v569, %v555
        %v589 = vadd.s32 %v569, %v556
        %v590 = vadd.s32 %v569, %v557
        %v591 = vadd.s32 %v569, %v558
        %v592 = vadd.s32 %v569, %v559
        %v593 = vadd.s32 %v569, %v560
        %v594 = vadd.s32 %v569, %v561
        %v595 = vadd.s32 %v569, %v562
        %v596 = vadd.s32 %v569, %v563
        %v597 = vadd.s32 %v569, %v564
        %v598 = vadd.s32 %v569, %v565
        %v599 = vadd.s32 %v569, %v566
        %v600 = vadd.s32 %v569, %v567
        %v601 = vadd.s32 %v569, %v568
        %vm602 = vcmp.lt.s32.totalorder %v570, 512
        %vm603 = vcmp.lt.s32.totalorder %v571, 512
        %vm604 = vcmp.lt.s32.totalorder %v572, 512
        %vm605 = vcmp.lt.s32.totalorder %v573, 512
        %vm606 = vcmp.lt.s32.totalorder %v574, 512
        %vm607 = vcmp.lt.s32.totalorder %v575, 512
        %vm608 = vcmp.lt.s32.totalorder %v576, 512
        %vm609 = vcmp.lt.s32.totalorder %v577, 512
        %vm610 = vcmp.lt.s32.totalorder %v578, 512
        %vm611 = vcmp.lt.s32.totalorder %v579, 512
        %vm612 = vcmp.lt.s32.totalorder %v580, 512
        %vm613 = vcmp.lt.s32.totalorder %v581, 512
        %vm614 = vcmp.lt.s32.totalorder %v582, 512
        %vm615 = vcmp.lt.s32.totalorder %v583, 512
        %vm616 = vcmp.lt.s32.totalorder %v584, 512
        %vm617 = vcmp.lt.s32.totalorder %v585, 512
        %vm618 = vcmp.lt.s32.totalorder %v586, 512
        %vm619 = vcmp.lt.s32.totalorder %v587, 512
        %vm620 = vcmp.lt.s32.totalorder %v588, 512
        %vm621 = vcmp.lt.s32.totalorder %v589, 512
        %vm622 = vcmp.lt.s32.totalorder %v590, 512
        %vm623 = vcmp.lt.s32.totalorder %v591, 512
        %vm624 = vcmp.lt.s32.totalorder %v592, 512
        %vm625 = vcmp.lt.s32.totalorder %v593, 512
        %vm626 = vcmp.lt.s32.totalorder %v594, 512
        %vm627 = vcmp.lt.s32.totalorder %v595, 512
        %vm628 = vcmp.lt.s32.totalorder %v596, 512
        %vm629 = vcmp.lt.s32.totalorder %v597, 512
        %vm630 = vcmp.lt.s32.totalorder %v598, 512
        %vm631 = vcmp.lt.s32.totalorder %v599, 512
        %vm632 = vcmp.lt.s32.totalorder %v600, 512
        %vm633 = vcmp.lt.s32.totalorder %v601, 512
        %v634 = vsub.f32 %v365, %v535
        %v635 = vsub.f32 %v368, %v535
        %v636 = vsub.f32 %v373, %v535
        %v637 = vsub.f32 %v376, %v535
        %v638 = vsub.f32 %v381, %v535
        %v639 = vsub.f32 %v384, %v535
        %v640 = vsub.f32 %v389, %v535
        %v641 = vsub.f32 %v392, %v535
        %v642 = vsub.f32 %v397, %v535
        %v643 = vsub.f32 %v400, %v535
        %v644 = vsub.f32 %v405, %v535
        %v645 = vsub.f32 %v408, %v535
        %v646 = vsub.f32 %v413, %v535
        %v647 = vsub.f32 %v416, %v535
        %v648 = vsub.f32 %v421, %v535
        %v649 = vsub.f32 %v424, %v535
        %v650 = vsub.f32 %v429, %v535
        %v651 = vsub.f32 %v432, %v535
        %v652 = vsub.f32 %v437, %v535
        %v653 = vsub.f32 %v440, %v535
        %v654 = vsub.f32 %v445, %v535
        %v655 = vsub.f32 %v448, %v535
        %v656 = vsub.f32 %v453, %v535
        %v657 = vsub.f32 %v456, %v535
        %v658 = vsub.f32 %v461, %v535
        %v659 = vsub.f32 %v464, %v535
        %v660 = vsub.f32 %v469, %v535
        %v661 = vsub.f32 %v472, %v535
        %v662 = vsub.f32 %v477, %v535
        %v663 = vsub.f32 %v480, %v535
        %v664 = vsub.f32 %v485, %v535
        %v665 = vsub.f32 %v488, %v535
        %v666 = vsel %vm602, 1, 0
        %v667 = vsel %vm603, 1, 0
        %v668 = vsel %vm604, 1, 0
        %v669 = vsel %vm605, 1, 0
        %v670 = vsel %vm606, 1, 0
        %v671 = vsel %vm607, 1, 0
        %v672 = vsel %vm608, 1, 0
        %v673 = vsel %vm609, 1, 0
        %v674 = vsel %vm610, 1, 0
        %v675 = vsel %vm611, 1, 0
        %v676 = vsel %vm612, 1, 0
        %v677 = vsel %vm613, 1, 0
        %v678 = vsel %vm614, 1, 0
        %v679 = vsel %vm615, 1, 0
        %v680 = vsel %vm616, 1, 0
        %v681 = vsel %vm617, 1, 0
        %v682 = vsel %vm618, 1, 0
        %v683 = vsel %vm619, 1, 0
        %v684 = vsel %vm620, 1, 0
        %v685 = vsel %vm621, 1, 0
        %v686 = vsel %vm622, 1, 0
        %v687 = vsel %vm623, 1, 0
        %v688 = vsel %vm624, 1, 0
        %v689 = vsel %vm625, 1, 0
        %v690 = vsel %vm626, 1, 0
        %v691 = vsel %vm627, 1, 0
        %v692 = vsel %vm628, 1, 0
        %v693 = vsel %vm629, 1, 0
        %v694 = vsel %vm630, 1, 0
        %v695 = vsel %vm631, 1, 0
        %v696 = vsel %vm632, 1, 0
        %v697 = vsel %vm633, 1, 0
        %vm698 = vcmp.eq.s32.totalorder %v666, 1
        %vm699 = vcmp.eq.s32.totalorder %v667, 1
        %vm700 = vcmp.eq.s32.totalorder %v668, 1
        %vm701 = vcmp.eq.s32.totalorder %v669, 1
        %vm702 = vcmp.eq.s32.totalorder %v670, 1
        %vm703 = vcmp.eq.s32.totalorder %v671, 1
        %vm704 = vcmp.eq.s32.totalorder %v672, 1
        %vm705 = vcmp.eq.s32.totalorder %v673, 1
        %vm706 = vcmp.eq.s32.totalorder %v674, 1
        %vm707 = vcmp.eq.s32.totalorder %v675, 1
        %vm708 = vcmp.eq.s32.totalorder %v676, 1
        %vm709 = vcmp.eq.s32.totalorder %v677, 1
        %vm710 = vcmp.eq.s32.totalorder %v678, 1
        %vm711 = vcmp.eq.s32.totalorder %v679, 1
        %vm712 = vcmp.eq.s32.totalorder %v680, 1
        %vm713 = vcmp.eq.s32.totalorder %v681, 1
        %vm714 = vcmp.eq.s32.totalorder %v682, 1
        %vm715 = vcmp.eq.s32.totalorder %v683, 1
        %vm716 = vcmp.eq.s32.totalorder %v684, 1
        %vm717 = vcmp.eq.s32.totalorder %v685, 1
        %vm718 = vcmp.eq.s32.totalorder %v686, 1
        %vm719 = vcmp.eq.s32.totalorder %v687, 1
        %vm720 = vcmp.eq.s32.totalorder %v688, 1
        %vm721 = vcmp.eq.s32.totalorder %v689, 1
        %vm722 = vcmp.eq.s32.totalorder %v690, 1
        %vm723 = vcmp.eq.s32.totalorder %v691, 1
        %vm724 = vcmp.eq.s32.totalorder %v692, 1
        %vm725 = vcmp.eq.s32.totalorder %v693, 1
        %vm726 = vcmp.eq.s32.totalorder %v694, 1
        %vm727 = vcmp.eq.s32.totalorder %v695, 1
        %vm728 = vcmp.eq.s32.totalorder %v696, 1
        %vm729 = vcmp.eq.s32.totalorder %v697, 1
        %v730 = vsel %vm698, %v634, 0.0
        %v731 = vsel %vm699, %v635, 0.0
        %v732 = vsel %vm700, %v636, 0.0
        %v733 = vsel %vm701, %v637, 0.0
        %v734 = vsel %vm702, %v638, 0.0
        %v735 = vsel %vm703, %v639, 0.0
        %v736 = vsel %vm704, %v640, 0.0
        %v737 = vsel %vm705, %v641, 0.0
        %v738 = vsel %vm706, %v642, 0.0
        %v739 = vsel %vm707, %v643, 0.0
        %v740 = vsel %vm708, %v644, 0.0
        %v741 = vsel %vm709, %v645, 0.0
        %v742 = vsel %vm710, %v646, 0.0
        %v743 = vsel %vm711, %v647, 0.0
        %v744 = vsel %vm712, %v648, 0.0
        %v745 = vsel %vm713, %v649, 0.0
        %v746 = vsel %vm714, %v650, 0.0
        %v747 = vsel %vm715, %v651, 0.0
        %v748 = vsel %vm716, %v652, 0.0
        %v749 = vsel %vm717, %v653, 0.0
        %v750 = vsel %vm718, %v654, 0.0
        %v751 = vsel %vm719, %v655, 0.0
        %v752 = vsel %vm720, %v656, 0.0
        %v753 = vsel %vm721, %v657, 0.0
        %v754 = vsel %vm722, %v658, 0.0
        %v755 = vsel %vm723, %v659, 0.0
        %v756 = vsel %vm724, %v660, 0.0
        %v757 = vsel %vm725, %v661, 0.0
        %v758 = vsel %vm726, %v662, 0.0
        %v759 = vsel %vm727, %v663, 0.0
        %v760 = vsel %vm728, %v664, 0.0
        %v761 = vsel %vm729, %v665, 0.0
        %v762 = vmul.f32 %v730, %v730
        %v763 = vmul.f32 %v731, %v731
        %v764 = vmul.f32 %v732, %v732
        %v765 = vmul.f32 %v733, %v733
        %v766 = vmul.f32 %v734, %v734
        %v767 = vmul.f32 %v735, %v735
        %v768 = vmul.f32 %v736, %v736
        %v769 = vmul.f32 %v737, %v737
        %v770 = vmul.f32 %v738, %v738
        %v771 = vmul.f32 %v739, %v739
        %v772 = vmul.f32 %v740, %v740
        %v773 = vmul.f32 %v741, %v741
        %v774 = vmul.f32 %v742, %v742
        %v775 = vmul.f32 %v743, %v743
        %v776 = vmul.f32 %v744, %v744
        %v777 = vmul.f32 %v745, %v745
        %v778 = vmul.f32 %v746, %v746
        %v779 = vmul.f32 %v747, %v747
        %v780 = vmul.f32 %v748, %v748
        %v781 = vmul.f32 %v749, %v749
        %v782 = vmul.f32 %v750, %v750
        %v783 = vmul.f32 %v751, %v751
        %v784 = vmul.f32 %v752, %v752
        %v785 = vmul.f32 %v753, %v753
        %v786 = vmul.f32 %v754, %v754
        %v787 = vmul.f32 %v755, %v755
        %v788 = vmul.f32 %v756, %v756
        %v789 = vmul.f32 %v757, %v757
        %v790 = vmul.f32 %v758, %v758
        %v791 = vmul.f32 %v759, %v759
        %v792 = vmul.f32 %v760, %v760
        %v793 = vmul.f32 %v761, %v761
        %v794 = vadd.f32 %v762, %v763
        %v795 = vadd.f32 %v794, %v764
        %v796 = vadd.f32 %v795, %v765
        %v797 = vadd.f32 %v796, %v766
        %v798 = vadd.f32 %v797, %v767
        %v799 = vadd.f32 %v798, %v768
        %v800 = vadd.f32 %v799, %v769
        %v801 = vadd.f32 %v800, %v770
        %v802 = vadd.f32 %v801, %v771
        %v803 = vadd.f32 %v802, %v772
        %v804 = vadd.f32 %v803, %v773
        %v805 = vadd.f32 %v804, %v774
        %v806 = vadd.f32 %v805, %v775
        %v807 = vadd.f32 %v806, %v776
        %v808 = vadd.f32 %v807, %v777
        %v809 = vadd.f32 %v808, %v778
        %v810 = vadd.f32 %v809, %v779
        %v811 = vadd.f32 %v810, %v780
        %v812 = vadd.f32 %v811, %v781
        %v813 = vadd.f32 %v812, %v782
        %v814 = vadd.f32 %v813, %v783
        %v815 = vadd.f32 %v814, %v784
        %v816 = vadd.f32 %v815, %v785
        %v817 = vadd.f32 %v816, %v786
        %v818 = vadd.f32 %v817, %v787
        %v819 = vadd.f32 %v818, %v788
        %v820 = vadd.f32 %v819, %v789
        %v821 = vadd.f32 %v820, %v790
        %v822 = vadd.f32 %v821, %v791
        %v823 = vadd.f32 %v822, %v792
        %v824 = vadd.f32 %v823, %v793
        %v825 = vrot.slane %v824, 4
        %v826 = vadd.f32 %v824, %v825
        %v827 = vrot.slane %v826, 2
        %v828 = vadd.f32 %v826, %v827
        %v829 = vrot.slane %v828, 1
        %v830 = vadd.f32 %v828, %v829
        %831 = vst [vmem:[%s137] sm:$0x1] %v527
        %832 = vst [vmem:[%s137 + $0x1] sm:$0x1] %v830
        %s833 = sand.u32 %s71, 1
        %s834 = scalar_lea.sflag [#allocation3], %s833
        %s835 = sand.u32 %s71, 1
        %s836 = smul.addr %s835, 2
        %s837 = scalar_lea.vmem [#allocation2], %s836
        // Predicated region
        $region29: #{tpu_custom_call.1} parent=27 // pred_check
          %p838 = pneg %p81
        $region30: #{tpu_custom_call.1} parent=27 // pred_check_branch
          %840 = sbr.rel (%p838) target = $region32
        $region31: #{tpu_custom_call.1} parent=27 // pred_region
          %s842 = ssub.s32 32, 32
          %843 = vsyncadd %s834, %s842
          %s844 = smul.addr %s16, 32
          %s845 = scalar_lea.hbm %s2, %s844
          %s847 = sshll.u32 %s837, 4
          %s848 = int_to_ptr.vmem [resolvable:$true] %s847
          %850 = dma.vmem_to_hbm [thread:$0]  %s848, 32, %s845, %s834
        $region32: #{tpu_custom_call.1} parent=27 // pred_fallthru
          _
      $region28: #{tpu_custom_call.1} parent=5 // pred_fallthru
        _
      %p851 = scmp.le.s32.totalorder 2, %s11
      // Predicated region
      $region33: #{tpu_custom_call.1} parent=5 // pred_check
        %p852 = pneg %p851
      $region34: #{tpu_custom_call.1} parent=5 // pred_check_branch
        %854 = sbr.rel (%p852) target = $region36
      $region35: #{tpu_custom_call.1} parent=5 // pred_region
        %s855 = ssub.s32 %s11, 2
        // Predicated region
        $region37: #{tpu_custom_call.1} parent=35 // pred_check
          %p856 = pneg %p87
        $region38: #{tpu_custom_call.1} parent=35 // pred_check_branch
          %858 = sbr.rel (%p856) target = $region40
        $region39: #{tpu_custom_call.1} parent=35 // pred_region
          %s859 = sand.u32 %s72, 1
          %s860 = scalar_lea.sflag [#allocation3], %s859
          %s861 = sand.u32 %s72, 1
          %s862 = smul.addr %s861, 2
          %s863 = scalar_lea.vmem [#allocation2], %s862
          %864 = dma.done %s860, 32
        $region40: #{tpu_custom_call.1} parent=35 // pred_fallthru
          _
      $region36: #{tpu_custom_call.1} parent=5 // pred_fallthru
        _
    $region6: #{tpu_custom_call.1} parent=1 // loop_footer
      %s15 = sadd.s32 1, %s11
    $region7: #{tpu_custom_call.1} parent=1 // loop_footer_branch
      %10 = sbr.rel target = $region3
    $region8: #{tpu_custom_call.1} parent=1 // loop_exit
      _
    %865 = vsyncpa [#allocation3], 1
    %s866 = scalar_lea.sflag [#allocation3], 1
    %867 = vsyncpa %s866, 1

</llo_original>
